<compile_context>
chip_gen: v7x
topology: tpu7x:2x2x1
jax: 0.10.0
libtpu: 0.0.40
codegen_flags: <defaults>
</compile_context>

<pallas_src>
import numpy as np
import jax
import jax.numpy as jnp
from jax import lax
from jax.experimental import pallas as pl
from jax.experimental.pallas import tpu as pltpu


def _make_persistence_kernel(dynamic_fetch):
    """Prim MST edge-weight sweep. d_ref is (n_rows, n) f32 with n_rows = round_up(n, 8)."""

    def kernel(d_ref, out_ref, usm_ref):
        n = d_ref.shape[1]
        n_pad = out_ref.shape[1]
        INF = jnp.float32(3.0e38)

        col_ids = lax.broadcasted_iota(jnp.int32, (1, n), 1)        # lane ids 0..n-1
        col_pad = lax.broadcasted_iota(jnp.int32, (1, n_pad), 1)
        sub_ids = lax.broadcasted_iota(jnp.int32, (8, n), 0)        # sublane ids 0..7

        in_tree0 = (col_ids == 0).astype(jnp.int32)                 # start Prim at vertex 0
        row0 = d_ref[pl.ds(0, 1), :]                                 # (1, n) static slice
        mindist0 = jnp.where(in_tree0 > 0, INF, row0)
        weights0 = jnp.zeros((1, n_pad), jnp.float32)

        def prim_body(i, carry):
            in_tree, mindist, weights = carry
            m = jnp.min(mindist, axis=1, keepdims=True)              # (1,1) next MST edge weight
            is_min = mindist == m
            weights = jnp.where(col_pad == i, m, weights)            # record weight at slot i

            if dynamic_fetch:
                # vector -> scalar: lowest min-attaining index, round-tripped through SMEM,
                # then used for an aligned dynamic row-group slice (O(n) per iteration).
                u = jnp.min(jnp.where(is_min, col_ids, n))           # rank-0 int32
                usm_ref[0] = u
                u_s = usm_ref[0]                                     # scalar-domain copy
                in_tree = jnp.maximum(in_tree, (col_ids == u_s).astype(jnp.int32))
                u8 = pl.multiple_of((u_s // 8) * 8, 8)               # 8-row-aligned group start
                grp = d_ref[pl.ds(u8, 8), :]                         # (8, n)
                row_u = jnp.min(jnp.where(sub_ids == u_s % 8, grp, INF),
                                axis=0, keepdims=True)               # (1, n) = row u of d
            else:
                # Fallback (no scalar extraction): masked cross-sublane min over the whole
                # matrix selects row u entirely in the vector domain (O(n^2) per iteration).
                u_kd = jnp.min(jnp.where(is_min, col_ids, n), axis=1, keepdims=True)
                in_tree = jnp.maximum(in_tree, (col_ids == u_kd).astype(jnp.int32))
                row_ids = lax.broadcasted_iota(jnp.int32, (d_ref.shape[0], 1), 0)
                row_u = jnp.min(jnp.where(row_ids == u_kd, d_ref[...], INF),
                                axis=0, keepdims=True)

            mindist = jnp.where(in_tree > 0, INF, jnp.minimum(mindist, row_u))
            return in_tree, mindist, weights

        _, _, weights = lax.fori_loop(0, n - 1, prim_body, (in_tree0, mindist0, weights0))
        out_ref[...] = weights                                       # lane-dense (1, n_pad)

    return kernel


def _pallas_mst_weights(distances1, dynamic_fetch):
    n = distances1.shape[0]
    n_rows = ((n + 7) // 8) * 8
    if n_rows != n:                           # keep the dynamic 8-row slice logically in-bounds
        distances1 = jnp.pad(distances1, ((0, n_rows - n), (0, 0)))
    n_pad = ((n + 127) // 128) * 128          # lane-dense output width

    # Working set: single-buffered (n_rows, n) input + O(n) state (+ full-matrix temp in the
    # fallback path) -> ~2x input + slack, clamped below physical VMEM (v7x has 64 MiB).
    vmem_limit = int(min(48 * 1024 * 1024,
                         max(32 * 1024 * 1024, 2 * 4 * n_rows * n + (8 << 20))))
    try:
        cap = pltpu.get_tpu_info().vmem_capacity_bytes
        vmem_limit = int(min(vmem_limit, (cap * 3) // 4))
    except Exception:
        pass

    return pl.pallas_call(
        _make_persistence_kernel(dynamic_fetch),
        out_shape=jax.ShapeDtypeStruct((1, n_pad), jnp.float32),
        # memory_space-only specs + no grid => whole matrix mapped once, single-buffered.
        in_specs=[pl.BlockSpec(memory_space=pltpu.MemorySpace.VMEM)],
        out_specs=pl.BlockSpec(memory_space=pltpu.MemorySpace.VMEM),
        scratch_shapes=[pltpu.SMEM((1,), jnp.int32)],
        compiler_params=pltpu.CompilerParams(vmem_limit_bytes=vmem_limit),
    )(distances1)


def topological_signature_distance(distances1):
    """Equivalent of TopologicalSignatureDistance().forward(distances1)."""
    n = distances1.shape[0]
    if distances1.dtype != jnp.float32:
        distances1 = distances1.astype(jnp.float32)
    try:
        out = _pallas_mst_weights(distances1, dynamic_fetch=True)
    except Exception:
        # Older Mosaic builds without vector->SMEM scalar stores / scalar-indexed dynamic
        # slices: use the all-vector-domain row selection instead.
        out = _pallas_mst_weights(distances1, dynamic_fetch=False)
    # Kruskal (the reference) emits MST edges in nondecreasing weight order; Prim does not,
    # so sort the (n-1,) edge-weight vector ascending in the wrapper (cheap XLA sort).
    return jnp.sort(out[0, : n - 1])


# ----------------------------- reference (numpy) -----------------------------
def _reference_signature(dist_np):
    """Kruskal / union-find, mirroring PersistentHomologyCalculation."""
    n = dist_np.shape[0]
    parent = list(range(n))

    def find(x):
        while parent[x] != x:
            parent[x] = parent[parent[x]]
            x = parent[x]
        return x

    iu, ju = np.triu_indices(n)
    w = dist_np[iu, ju]
    order = np.argsort(w, kind="stable")
    sig = []
    for e in order:
        u, v = int(iu[e]), int(ju[e])
        ru, rv = find(u), find(v)
        if ru == rv:
            continue
        parent[ru] = rv
        sig.append(dist_np[u, v])
    return np.asarray(sig, dtype=np.float32)


if __name__ == "__main__":
    key = jax.random.PRNGKey(0)
    n, d = 16, 32
    pts = jax.random.normal(key, (n, d), jnp.float32)
    sq = jnp.sum((pts[:, None, :] - pts[None, :, :]) ** 2, axis=-1)
    distances1 = jnp.sqrt(jnp.maximum(sq, 0.0))          # (16, 16) symmetric, zero diag

    sig1 = topological_signature_distance(distances1)
    sig1 = jax.block_until_ready(sig1)

    ref = _reference_signature(np.asarray(distances1))
    assert sig1.shape == (n - 1,), sig1.shape
    assert np.allclose(np.asarray(sig1), ref, rtol=1e-5, atol=1e-5), (sig1, ref)
    print("KERNEL_OK")
</pallas_src>

<mosaic_0001>
module attributes {stable_mosaic.version = 11 : i64} {
  func.func @kernel(%arg0: memref<16x16xf32, #tpu.memory_space<vmem>>, %arg1: memref<1x128xf32, #tpu.memory_space<vmem>>, %arg2: memref<1xi32, #tpu.memory_space<smem>>) attributes {dimension_semantics = [], scalar_prefetch = 0 : i64, scratch_operands = 1 : i64, tpu.core_type = #tpu.core_type<tc>} {
    %0 = tpu.iota {dimensions = array<i32: 1>} : vector<1x16xi32>
    %1 = tpu.iota {dimensions = array<i32: 1>} : vector<1x128xi32>
    %c0_i32 = arith.constant 0 : i32
    %2 = vector.broadcast %c0_i32 : i32 to vector<1x16xi32>
    %3 = arith.cmpi eq, %0, %2 : vector<1x16xi32>
    %4 = arith.extui %3 : vector<1x16xi1> to vector<1x16xi32>
    %c0 = arith.constant 0 : index
    %c0_0 = arith.constant 0 : index
    %5 = vector.load %arg0[%c0, %c0_0] : memref<16x16xf32, #tpu.memory_space<vmem>>, vector<1x16xf32>
    %c0_i32_1 = arith.constant 0 : i32
    %6 = vector.broadcast %c0_i32_1 : i32 to vector<1x16xi32>
    %7 = arith.cmpi sgt, %4, %6 : vector<1x16xi32>
    %cst = arith.constant 3.000000e+38 : f32
    %8 = vector.broadcast %cst : f32 to vector<1x16xf32>
    %9 = arith.select %7, %8, %5 : vector<1x16xi1>, vector<1x16xf32>
    %cst_2 = arith.constant 0.000000e+00 : f32
    %10 = vector.broadcast %cst_2 : f32 to vector<1x128xf32>
    %cst_3 = arith.constant 3.000000e+38 : f32
    %c0_i32_4 = arith.constant 0 : i32
    %c15_i32 = arith.constant 15 : i32
    %11 = arith.addi %c0_i32_4, %c15_i32 : i32
    %c1_i32 = arith.constant 1 : i32
    %12:3 = scf.for %arg3 = %c0_i32_4 to %11 step %c1_i32 iter_args(%arg4 = %4, %arg5 = %9, %arg6 = %10) -> (vector<1x16xi32>, vector<1x16xf32>, vector<1x128xf32>)  : i32 {
      %cst_8 = arith.constant dense<0x7F800000> : vector<1xf32>
      %14 = vector.multi_reduction <minimumf>, %arg5, %cst_8 [1] : vector<1x16xf32> to vector<1xf32>
      %15 = vector.shape_cast %14 : vector<1xf32> to vector<1x1xf32>
      %16 = vector.broadcast %15 : vector<1x1xf32> to vector<1x16xf32>
      %17 = arith.cmpf oeq, %arg5, %16 : vector<1x16xf32>
      %18 = vector.broadcast %arg3 : i32 to vector<1x128xi32>
      %19 = arith.cmpi eq, %1, %18 : vector<1x128xi32>
      %20 = vector.shape_cast %15 : vector<1x1xf32> to vector<1x1xf32>
      %21 = vector.broadcast %20 : vector<1x1xf32> to vector<1x128xf32>
      %22 = arith.select %19, %21, %arg6 : vector<1x128xi1>, vector<1x128xf32>
      %c16_i32 = arith.constant 16 : i32
      %23 = vector.broadcast %c16_i32 : i32 to vector<1x16xi32>
      %24 = arith.select %17, %0, %23 : vector<1x16xi1>, vector<1x16xi32>
      %cst_9 = arith.constant dense<2147483647> : vector<1xi32>
      %25 = vector.multi_reduction <minsi>, %24, %cst_9 [1] : vector<1x16xi32> to vector<1xi32>
      %26 = vector.shape_cast %25 : vector<1xi32> to vector<1x1xi32>
      %27 = vector.broadcast %26 : vector<1x1xi32> to vector<1x16xi32>
      %28 = arith.cmpi eq, %0, %27 : vector<1x16xi32>
      %29 = arith.extui %28 : vector<1x16xi1> to vector<1x16xi32>
      %30 = arith.maxsi %arg4, %29 : vector<1x16xi32>
      %31 = tpu.iota {dimensions = array<i32: 0>} : vector<16x1xi32>
      %32 = vector.broadcast %26 : vector<1x1xi32> to vector<16x1xi32>
      %33 = arith.cmpi eq, %31, %32 : vector<16x1xi32>
      %c0_10 = arith.constant 0 : index
      %c0_11 = arith.constant 0 : index
      %34 = vector.load %arg0[%c0_10, %c0_11] : memref<16x16xf32, #tpu.memory_space<vmem>>, vector<16x16xf32>
      %35 = vector.shape_cast %33 : vector<16x1xi1> to vector<16x1xi1>
      %36 = vector.broadcast %35 : vector<16x1xi1> to vector<16x16xi1>
      %37 = vector.broadcast %cst_3 : f32 to vector<16x16xf32>
      %38 = arith.select %36, %34, %37 : vector<16x16xi1>, vector<16x16xf32>
      %cst_12 = arith.constant dense<0x7F800000> : vector<16xf32>
      %39 = vector.multi_reduction <minimumf>, %38, %cst_12 [0] : vector<16x16xf32> to vector<16xf32>
      %40 = vector.shape_cast %39 : vector<16xf32> to vector<1x16xf32>
      %c0_i32_13 = arith.constant 0 : i32
      %41 = vector.broadcast %c0_i32_13 : i32 to vector<1x16xi32>
      %42 = arith.cmpi sgt, %30, %41 : vector<1x16xi32>
      %43 = arith.minimumf %arg5, %40 : vector<1x16xf32>
      %44 = vector.broadcast %cst_3 : f32 to vector<1x16xf32>
      %45 = arith.select %42, %44, %43 : vector<1x16xi1>, vector<1x16xf32>
      scf.yield %30, %45, %22 : vector<1x16xi32>, vector<1x16xf32>, vector<1x128xf32>
    }
    %c15_i32_5 = arith.constant 15 : i32
    %c0_6 = arith.constant 0 : index
    %c0_7 = arith.constant 0 : index
    %13 = vector.load %arg1[%c0_6, %c0_7] : memref<1x128xf32, #tpu.memory_space<vmem>>, vector<1x128xf32>
    tpu.vector_store %arg1[%c0_6, %c0_7], %12#2 {strides = array<i32>} : memref<1x128xf32, #tpu.memory_space<vmem>>, vector<1x128xf32>,
    return
  }
}

</mosaic_0001>

<llo_original>
// kernel: tpu_custom_call.1
$region0: #{tpu_custom_call.1}
  #allocation0 [shape = 'u32[]', space=smem, size = 0x4, offset = 0x4, fixed_abs, tag = 'smem constant byte address 0x4 - core index']
  #allocation1 [shape = 'u32[144,128]{1,0:T(1,128)}', space=vmem, size = 0x12000, scoped, tag = 'internal scratch']
  #allocation2 [shape = 's32[1]{0:T(128)}', space=smem, size = 0x200, scoped, tag = 'scratch operand']
  %s0 = inlined_call_operand.hbm [shape: f32[16,16], index: 0, kind: input, shape index: {}]
  %s1 = inlined_call_operand.hbm [shape: f32[1,128], index: 1, kind: output, shape index: {}]
  %s2 = sld [smem:[#allocation0]]
  $region25: #{tpu_custom_call.1} parent=0
    _
  %s4 = ssub.s32 1, %s2
  %s5 = scalar_select 0, %s4, %s2
  $region1: #{tpu_custom_call.1} parent=0
    #allocation3 [shape = 'u8[8192]{0}', space=vmem, size = 0x2000, scoped, tag = 'input window, operand 0, single buffered']
    #allocation4 [shape = 's32[1]{0}', space=sflag, size = 0x4, scoped, tag = 'scoped memory for tpu_custom_call.1']
    #allocation5 [shape = 's32[1]{0}', space=sflag, size = 0x4, scoped, tag = 'scoped memory for tpu_custom_call.1']
    #allocation6 [shape = 'u8[512]{0}', space=vmem, size = 0x400, scoped, tag = 'output window, operand 0, single buffered']
    %6 = vsyncpa [#allocation4], 0
    %7 = vsyncpa [#allocation5], 0
    // Predicated region
    $region2: #{tpu_custom_call.1} parent=1 // pred_check
      _
    $region3: #{tpu_custom_call.1} parent=1 // pred_check_branch
      %9 = sbr.rel (0) target = $region5
    $region4: #{tpu_custom_call.1} parent=1 // pred_region
      %s11 = ssub.s32 256, 256
      %12 = vsyncadd [#allocation4], %s11
      %s13 = sshll.u32 [#allocation3], 4
      %s14 = int_to_ptr.vmem [resolvable:$true] %s13
      %19 = dma.hbm_to_vmem [thread:$0]  %s0, 256, %s14, [#allocation4], 128, 128, 8
    $region5: #{tpu_custom_call.1} parent=1 // pred_fallthru
      _
    // Predicated region
    $region6: #{tpu_custom_call.1} parent=1 // pred_check
      _
    $region7: #{tpu_custom_call.1} parent=1 // pred_check_branch
      %21 = sbr.rel (0) target = $region9
    $region8: #{tpu_custom_call.1} parent=1 // pred_region
      %22 = dma.done [#allocation4], 256
    $region9: #{tpu_custom_call.1} parent=1 // pred_fallthru
      _
    %v23 = vlaneseq
    %v24 = vand.u32 %v23, 127
    %vm25 = vcmp.eq.s32.totalorder %v24, 0
    %v26 = vsel %vm25, 1, 0
    %v27 = vld [vmem:[#allocation3] sm:$0x1]
    %vm28 = vcmp.gt.s32.totalorder %v26, 0
    %v29 = vsel %vm28, 3e+38, %v27
    loop: start=0, step=1, limit=15
    $region10: #{tpu_custom_call.1} parent=1 // loop_pre_header
      _
    $region11: #{tpu_custom_call.1} parent=1 // loop_header
      %s31 = sphi 0, %s35
      %p32 = scmp.ge.s32.totalorder %s31, 15
      %v36 = vphi %v26, %v66
      %v37 = vphi %v29, %v96
      %v38 = vphi 0.0, %v46
    $region12: #{tpu_custom_call.1} parent=1 // loop_header_branch
      %34 = sbr.rel (%p32) target = $region16
    $region13: #{tpu_custom_call.1} parent=1 // loop_body
      %vm39 = vcmask 122880
      %v40 = vsel %vm39, %v37, inf
      %41 = vmin.xlane.f32.xlu0 %v40
      %v42 = vpop.xlane.xlu0 %41
      %vm43 = vcmp.eq.f32.partialorder %v37, %v42
      %v44 = vstv %s31
      %vm45 = vcmp.eq.s32.totalorder %v24, %v44
      %v46 = vsel %vm45, %v42, %v38
      %v47 = vsel %vm43, %v24, 16
      %v48 = vsel %vm39, %v47, 2147483647
      %v49 = vand.u32 %v48, 65535
      %v50 = vshra.s32 %v48, 16
      %v51 = vcvt.s32.f32 %v49
      %v52 = vcvt.s32.f32 %v50
      %53 = vmin.xlane.f32.xlu0 %v52
      %v54 = vpop.xlane.xlu0 %53
      %vm55 = vcmp.eq.f32.partialorder %v52, %v54
      %v56 = vsel %vm55, %v51, inf
      %57 = vmin.xlane.f32.xlu0 %v56
      %v58 = vpop.xlane.xlu0 %57
      %v59 = vcvt.f32.s32 %v58
      %v60 = vcvt.f32.s32 %v54
      %v61 = vshll.u32 %v60, 16
      %v62 = vadd.s32 %v61, %v59
      %vm63 = vcmp.eq.s32.totalorder %v24, %v62
      %v64 = vsel %vm63, 1, 0
      %vm65 = vcmp.gt.s32.totalorder %v36, %v64
      %v66 = vsel %vm65, %v36, %v64
      %v67 = vlaneseq
      %v68 = vshrl.u32 %v67, 7
      %v69 = vadd.s32 %v68, 8
      %v70 = vlaneseq
      %v71 = vshrl.u32 %v70, 7
      %v72 = vsub.s32 0, %v71
      %v73 = vrot.slane %v62, %v72
      %vm74 = vcmp.eq.s32.totalorder %v68, %v73
      %vm75 = vcmp.eq.s32.totalorder %v69, %v73
      %v76 = vld [vmem:[#allocation3] sm:$0xff]
      %v77 = vld [vmem:[#allocation3 + $0x8] sm:$0xff]
      %v78 = vsel %vm74, 1, 0
      %v79 = vsel %vm75, 1, 0
      %vm80 = vcmp.eq.s32.totalorder %v78, 1
      %vm81 = vcmp.eq.s32.totalorder %v79, 1
      %v82 = vsel %vm80, %v76, 3e+38
      %v83 = vsel %vm81, %v77, 3e+38
      %vm84 = vcmask 130048
      %v85 = vsel %vm84, %v82, inf
      %v86 = vsel %vm84, %v83, inf
      %v87 = vmin.f32 %v85, %v86
      %v88 = vrot.slane %v87, 4
      %v89 = vmin.f32 %v87, %v88
      %v90 = vrot.slane %v89, 2
      %v91 = vmin.f32 %v89, %v90
      %v92 = vrot.slane %v91, 1
      %v93 = vmin.f32 %v91, %v92
      %vm94 = vcmp.gt.s32.totalorder %v66, 0
      %v95 = vmin.f32 %v37, %v93
      %v96 = vsel %vm94, 3e+38, %v95
    $region14: #{tpu_custom_call.1} parent=1 // loop_footer
      %s35 = sadd.s32 1, %s31
    $region15: #{tpu_custom_call.1} parent=1 // loop_footer_branch
      %30 = sbr.rel target = $region11
    $region16: #{tpu_custom_call.1} parent=1 // loop_exit
      _
    %97 = vst [vmem:[#allocation6] sm:$0x1] %v38
    // Predicated region
    $region17: #{tpu_custom_call.1} parent=1 // pred_check
      _
    $region18: #{tpu_custom_call.1} parent=1 // pred_check_branch
      %99 = sbr.rel (0) target = $region20
    $region19: #{tpu_custom_call.1} parent=1 // pred_region
      %s101 = ssub.s32 16, 16
      %102 = vsyncadd [#allocation5], %s101
      %s104 = sshll.u32 [#allocation6], 4
      %s105 = int_to_ptr.vmem [resolvable:$true] %s104
      %107 = dma.vmem_to_hbm [thread:$0]  %s105, 16, %s1, [#allocation5]
    $region20: #{tpu_custom_call.1} parent=1 // pred_fallthru
      _
    // Predicated region
    $region21: #{tpu_custom_call.1} parent=1 // pred_check
      _
    $region22: #{tpu_custom_call.1} parent=1 // pred_check_branch
      %109 = sbr.rel (0) target = $region24
    $region23: #{tpu_custom_call.1} parent=1 // pred_region
      %110 = dma.done [#allocation5], 16
    $region24: #{tpu_custom_call.1} parent=1 // pred_fallthru
      _
    %111 = vsyncpa [#allocation4], 1
    %112 = vsyncpa [#allocation5], 1

</llo_original>
